<compile_context>
chip_gen: v7x
topology: tpu7x:2x2x1
jax: 0.10.0
libtpu: 0.0.40
codegen_flags: <defaults>
</compile_context>

<pallas_src>
import jax
import jax.numpy as jnp
from jax.experimental import pallas as pl
from jax.experimental.pallas import tpu as pltpu

_LANES = 128          # vreg lane width
_SUBLANES = 8         # vreg sublane depth (f32)
_BLOCK_ROWS = 1024    # rows per grid step for the scaled-N path (512 KiB/block)


def linear_kernel(x_ref, w_ref, b_ref, o_ref):
    # x_ref: (rows, 128) f32 in VMEM; w_ref / b_ref: (1,) f32 scalars in SMEM.
    w = w_ref[0]
    b = b_ref[0]
    # One VPU multiply-add per vreg; scalar splat rides the free broadcast path.
    o_ref[...] = x_ref[...] * w + b


def linear_forward(x, weight, bias):
    """nn.Linear(1,1) forward: y = x @ W^T + b.  x: (N, 1) f32 -> (N, 1) f32."""
    orig_shape = x.shape
    n = x.size

    w1 = weight.reshape(1).astype(jnp.float32)
    b1 = bias.reshape(1).astype(jnp.float32)

    # Lane-dense slab: flatten, pad, view as (rows_padded, 128).
    rows = pl.cdiv(n, _LANES)
    if rows > _BLOCK_ROWS:
        rows_padded = pl.cdiv(rows, _BLOCK_ROWS) * _BLOCK_ROWS
        grid_rows = rows_padded // _BLOCK_ROWS
        tile_rows = _BLOCK_ROWS
    else:
        rows_padded = pl.cdiv(rows, _SUBLANES) * _SUBLANES
        grid_rows = 1
        tile_rows = rows_padded

    total = rows_padded * _LANES
    flat = jnp.pad(x.reshape(-1).astype(jnp.float32), (0, total - n))
    slab = flat.reshape(rows_padded, _LANES)

    out_shape = jax.ShapeDtypeStruct((rows_padded, _LANES), jnp.float32)

    if grid_rows == 1:
        # Single full block, no grid: zero pipelining / bookkeeping overhead.
        out = pl.pallas_call(
            linear_kernel,
            out_shape=out_shape,
            in_specs=[
                pl.BlockSpec(memory_space=pltpu.MemorySpace.VMEM),
                pl.BlockSpec(memory_space=pltpu.MemorySpace.SMEM),
                pl.BlockSpec(memory_space=pltpu.MemorySpace.SMEM),
            ],
            out_specs=pl.BlockSpec(memory_space=pltpu.MemorySpace.VMEM),
        )(slab, w1, b1)
    else:
        # Scaled-N path: (1024, 128) tiles, row axis parallel (megacore on v7x).
        out = pl.pallas_call(
            linear_kernel,
            out_shape=out_shape,
            grid=(grid_rows,),
            in_specs=[
                pl.BlockSpec((tile_rows, _LANES), lambda i: (i, 0)),
                pl.BlockSpec(memory_space=pltpu.MemorySpace.SMEM),
                pl.BlockSpec(memory_space=pltpu.MemorySpace.SMEM),
            ],
            out_specs=pl.BlockSpec((tile_rows, _LANES), lambda i: (i, 0)),
            compiler_params=pltpu.CompilerParams(
                dimension_semantics=("parallel",)),
        )(slab, w1, b1)

    # Slice the zero-padded tail back off and restore (N, 1).
    return out.reshape(-1)[:n].reshape(orig_shape)


class LinearRegressionModel:
    """JAX/Pallas port of the PyTorch LinearRegressionModel (nn.Linear(1, 1))."""

    def __init__(self, key):
        # nn.Linear(1, 1) init: U(-1/sqrt(in), +1/sqrt(in)) = U(-1, 1).
        kw, kb = jax.random.split(key)
        self.weight = jax.random.uniform(kw, (1, 1), jnp.float32, -1.0, 1.0)
        self.bias = jax.random.uniform(kb, (1,), jnp.float32, -1.0, 1.0)

    def __call__(self, x):
        return linear_forward(x, self.weight, self.bias)


if __name__ == "__main__":
    key = jax.random.PRNGKey(0)

    # Same data as the PyTorch script: 23 scalar samples, viewed as (-1, 1).
    x = jnp.array(
        [12.4, 14.3, 14.5, 14.9, 16.1, 16.9, 16.5, 15.4, 17.0, 17.9, 18.8,
         20.3, 22.4, 19.4, 15.5, 16.7, 17.3, 18.4, 19.2, 17.4, 19.5, 19.7, 21.2],
        dtype=jnp.float32,
    ).reshape(-1, 1)

    model = LinearRegressionModel(key)
    y = model(x)
    jax.block_until_ready(y)

    # Reference check in plain JAX (exact nn.Linear semantics).
    y_ref = x @ model.weight.T + model.bias
    assert y.shape == (23, 1)
    assert jnp.allclose(y, y_ref, atol=1e-5), "mismatch vs reference"

    # Also exercise the tiled (scaled-N) path once for coverage.
    big_x = jax.random.uniform(key, (300_000, 1), jnp.float32, 0.0, 10.0)
    big_y = model(big_x)
    jax.block_until_ready(big_y)
    big_ref = big_x @ model.weight.T + model.bias
    assert big_y.shape == big_x.shape
    assert jnp.allclose(big_y, big_ref, atol=1e-5), "mismatch vs reference (big)"

    print("KERNEL_OK")
</pallas_src>

<mosaic_0001>
module attributes {stable_mosaic.version = 11 : i64} {
  func.func @linear_kernel(%arg0: memref<8x128xf32, #tpu.memory_space<vmem>>, %arg1: memref<1xf32, #tpu.memory_space<smem>>, %arg2: memref<1xf32, #tpu.memory_space<smem>>, %arg3: memref<8x128xf32, #tpu.memory_space<vmem>>) attributes {dimension_semantics = [], scalar_prefetch = 0 : i64, scratch_operands = 0 : i64, tpu.core_type = #tpu.core_type<tc>} {
    %c0 = arith.constant 0 : index
    %0 = memref.load %arg1[%c0] : memref<1xf32, #tpu.memory_space<smem>>
    %c0_0 = arith.constant 0 : index
    %1 = memref.load %arg2[%c0_0] : memref<1xf32, #tpu.memory_space<smem>>
    %c0_1 = arith.constant 0 : index
    %c0_2 = arith.constant 0 : index
    %2 = vector.load %arg0[%c0_1, %c0_2] : memref<8x128xf32, #tpu.memory_space<vmem>>, vector<8x128xf32>
    %3 = vector.broadcast %0 : f32 to vector<8x128xf32>
    %4 = arith.mulf %2, %3 : vector<8x128xf32>
    %5 = vector.broadcast %1 : f32 to vector<8x128xf32>
    %6 = arith.addf %4, %5 : vector<8x128xf32>
    %c0_3 = arith.constant 0 : index
    %c0_4 = arith.constant 0 : index
    %7 = vector.load %arg3[%c0_3, %c0_4] : memref<8x128xf32, #tpu.memory_space<vmem>>, vector<8x128xf32>
    tpu.vector_store %arg3[%c0_3, %c0_4], %6 {strides = array<i32>} : memref<8x128xf32, #tpu.memory_space<vmem>>, vector<8x128xf32>,
    return
  }
}

</mosaic_0001>

<llo_original>
// kernel: tpu_custom_call.1
$region0: #{tpu_custom_call.1}
  #allocation0 [shape = 'u32[]', space=smem, size = 0x4, offset = 0x4, fixed_abs, tag = 'smem constant byte address 0x4 - core index']
  #allocation1 [shape = 'u32[144,128]{1,0:T(1,128)}', space=vmem, size = 0x12000, scoped, tag = 'internal scratch']
  #allocation2 [shape = 'f32[1]{0:T(128)S(6)}', space=smem, size = 0x200, scoped, tag = 'scoped memory for tpu_custom_call.1']
  #allocation3 [shape = 'f32[1]{0:T(128)S(6)}', space=smem, size = 0x200, scoped, tag = 'scoped memory for tpu_custom_call.1']
  %s0 = inlined_call_operand.hbm [shape: f32[8,128], index: 0, kind: input, shape index: {}]
  %s1 = inlined_call_operand.<no memory space> [shape: f32[1], index: 1, kind: input, shape index: {}]
  %s2 = inlined_call_operand.<no memory space> [shape: f32[1], index: 2, kind: input, shape index: {}]
  %s3 = inlined_call_operand.hbm [shape: f32[8,128], index: 3, kind: output, shape index: {}]
  %s4 = sld [smem:[#allocation0]]
  $region26: #{tpu_custom_call.1} parent=0
    _
  %s6 = ssub.s32 1, %s4
  %s7 = scalar_select 0, %s6, %s4
  %8 = sst [smem:[#allocation2]] %s1
  %9 = sst [smem:[#allocation3]] %s2
  $region1: #{tpu_custom_call.1} parent=0
    #allocation4 [shape = 'u8[4096]{0}', space=vmem, size = 0x1000, scoped, tag = 'input window, operand 0, single buffered']
    #allocation5 [shape = 's32[1]{0}', space=sflag, size = 0x4, scoped, tag = 'scoped memory for tpu_custom_call.1']
    #allocation6 [shape = 's32[1]{0}', space=sflag, size = 0x4, scoped, tag = 'scoped memory for tpu_custom_call.1']
    #allocation7 [shape = 'u8[4096]{0}', space=vmem, size = 0x1000, scoped, tag = 'output window, operand 0, single buffered']
    %10 = vsyncpa [#allocation5], 0
    %11 = vsyncpa [#allocation6], 0
    // Predicated region
    $region2: #{tpu_custom_call.1} parent=1 // pred_check
      _
    $region3: #{tpu_custom_call.1} parent=1 // pred_check_branch
      %13 = sbr.rel (0) target = $region5
    $region4: #{tpu_custom_call.1} parent=1 // pred_region
      %s15 = ssub.s32 128, 128
      %16 = vsyncadd [#allocation5], %s15
      %s18 = sshll.u32 [#allocation4], 4
      %s19 = int_to_ptr.vmem [resolvable:$true] %s18
      %21 = dma.hbm_to_vmem [thread:$0]  %s0, 128, %s19, [#allocation5]
    $region5: #{tpu_custom_call.1} parent=1 // pred_fallthru
      _
    // Predicated region
    $region6: #{tpu_custom_call.1} parent=1 // pred_check
      _
    $region7: #{tpu_custom_call.1} parent=1 // pred_check_branch
      %23 = sbr.rel (0) target = $region9
    $region8: #{tpu_custom_call.1} parent=1 // pred_region
      _
    $region9: #{tpu_custom_call.1} parent=1 // pred_fallthru
      _
    // Predicated region
    $region10: #{tpu_custom_call.1} parent=1 // pred_check
      _
    $region11: #{tpu_custom_call.1} parent=1 // pred_check_branch
      %25 = sbr.rel (0) target = $region13
    $region12: #{tpu_custom_call.1} parent=1 // pred_region
      _
    $region13: #{tpu_custom_call.1} parent=1 // pred_fallthru
      _
    // Predicated region
    $region14: #{tpu_custom_call.1} parent=1 // pred_check
      _
    $region15: #{tpu_custom_call.1} parent=1 // pred_check_branch
      %27 = sbr.rel (0) target = $region17
    $region16: #{tpu_custom_call.1} parent=1 // pred_region
      %28 = dma.done [#allocation5], 128
    $region17: #{tpu_custom_call.1} parent=1 // pred_fallthru
      _
    %s29 = sld [smem:[#allocation2]]
    %s30 = sld [smem:[#allocation3]]
    %v31 = vld [vmem:[#allocation4] sm:$0xff]
    %v32 = vstv %s29
    %v33 = vmul.f32 %v31, %v32
    %v34 = vstv %s30
    %v35 = vadd.f32 %v33, %v34
    %36 = vst [vmem:[#allocation7] sm:$0xff] %v35
    // Predicated region
    $region18: #{tpu_custom_call.1} parent=1 // pred_check
      _
    $region19: #{tpu_custom_call.1} parent=1 // pred_check_branch
      %38 = sbr.rel (0) target = $region21
    $region20: #{tpu_custom_call.1} parent=1 // pred_region
      %s40 = ssub.s32 128, 128
      %41 = vsyncadd [#allocation6], %s40
      %s43 = sshll.u32 [#allocation7], 4
      %s44 = int_to_ptr.vmem [resolvable:$true] %s43
      %46 = dma.vmem_to_hbm [thread:$0]  %s44, 128, %s3, [#allocation6]
    $region21: #{tpu_custom_call.1} parent=1 // pred_fallthru
      _
    // Predicated region
    $region22: #{tpu_custom_call.1} parent=1 // pred_check
      _
    $region23: #{tpu_custom_call.1} parent=1 // pred_check_branch
      %48 = sbr.rel (0) target = $region25
    $region24: #{tpu_custom_call.1} parent=1 // pred_region
      %49 = dma.done [#allocation6], 128
    $region25: #{tpu_custom_call.1} parent=1 // pred_fallthru
      _
    %50 = vsyncpa [#allocation5], 1
    %51 = vsyncpa [#allocation6], 1

</llo_original>
